<compile_context>
chip_gen: v7x
topology: tpu7x:2x2x1
jax: 0.10.0
libtpu: 0.0.40
codegen_flags: <defaults>
</compile_context>

<pallas_src>
import jax
import jax.numpy as jnp
from jax.experimental import pallas as pl
from jax.experimental.pallas import tpu as pltpu


def mlp_kernel(x_ref, w1_ref, b1_ref, w2_ref, b2_ref, w3_ref, b3_ref, o_ref):
    # x arrives f32; bf16 cast happens here (VPU), hidden under the layer-1 matmul.
    x = x_ref[...].astype(jnp.bfloat16)
    # Layer 1: (TB, 784)bf16 @ (784, 256)bf16 -> f32 acc, +bias, ReLU, -> bf16
    h1 = jnp.dot(x, w1_ref[...], preferred_element_type=jnp.float32)
    h1 = jnp.maximum(h1 + b1_ref[...], 0.0).astype(jnp.bfloat16)
    # Layer 2: (TB, 256)bf16 @ (256, 64)bf16 -> f32 acc, +bias, ReLU, -> bf16
    h2 = jnp.dot(h1, w2_ref[...], preferred_element_type=jnp.float32)
    h2 = jnp.maximum(h2 + b2_ref[...], 0.0).astype(jnp.bfloat16)
    # Layer 3: (TB, 64)bf16 @ (64, 128)bf16 (zero-padded cols) -> f32, +bias, ReLU
    h3 = jnp.dot(h2, w3_ref[...], preferred_element_type=jnp.float32)
    o_ref[...] = jnp.maximum(h3 + b3_ref[...], 0.0).astype(o_ref.dtype)


def prepare_params(w1, b1, w2, b2, w3, b3, *, lane_pad=128):
    """One-time (init-time) parameter prep — NOT done per forward call.

    Weights -> bf16, biases -> f32 shaped (1, out). The last layer is zero-padded
    along the output dim to `lane_pad` so the kernel's output store is lane-dense;
    the wrapper slices the padded columns back off.
    """
    d_out = w3.shape[1]
    pad = (-d_out) % lane_pad
    w3p = jnp.pad(w3, ((0, 0), (0, pad)))
    b3p = jnp.pad(jnp.reshape(b3, (1, -1)), ((0, 0), (0, pad)))
    return (
        w1.astype(jnp.bfloat16), jnp.reshape(b1, (1, -1)).astype(jnp.float32),
        w2.astype(jnp.bfloat16), jnp.reshape(b2, (1, -1)).astype(jnp.float32),
        w3p.astype(jnp.bfloat16), b3p.astype(jnp.float32),
        d_out,
    )


def _pick_tb(B):
    # Multiple of 16 (bf16 packs 2 rows/sublane for the h1/h2 intermediates).
    bp16 = ((B + 15) // 16) * 16
    if bp16 <= 128:
        return bp16        # tiny batch: single grid step, no extra tiling overhead
    if B >= 512:
        return 256         # fills v6e/v7x 256-row MXU, still >= 2 grid steps
    return 128             # keeps >= 2 steps for v7x's 2 TCs; v5e's 128x128 MXU fill


def mlp_forward(x, params, *, tb=None):
    """x: (B, 784) f32.  params: output of prepare_params (call once, reuse)."""
    w1b, b1f, w2b, b2f, w3b, b3f, d_out = params
    B, D_in = x.shape
    D_h1, D_h2, D_out_p = w1b.shape[1], w2b.shape[1], w3b.shape[1]

    TB = _pick_tb(B) if tb is None else tb
    Bp = ((B + TB - 1) // TB) * TB
    xp = jnp.pad(x, ((0, Bp - B), (0, 0))) if Bp != B else x

    grid = (Bp // TB,)

    def resident(a):
        # Constant index_map: fetched once, stays VMEM-resident across the batch grid.
        # TODO(synk): single-buffer these (pipeline_mode=pl.Buffered(1)) if VMEM
        # pressure ever matters; the default double buffer wastes <0.5 MB here.
        return pl.BlockSpec(a.shape, lambda i: (0, 0))

    flops = 2 * Bp * (D_in * D_h1 + D_h1 * D_h2 + D_h2 * D_out_p)
    bytes_accessed = (
        xp.size * 4                                   # f32 activations in
        + (w1b.size + w2b.size + w3b.size) * 2        # bf16 weights (loaded once)
        + (b1f.size + b2f.size + b3f.size) * 4        # f32 biases
        + Bp * D_out_p * 4                            # f32 lane-dense output
    )

    out = pl.pallas_call(
        mlp_kernel,
        out_shape=jax.ShapeDtypeStruct((Bp, D_out_p), jnp.float32),
        grid=grid,
        in_specs=[
            pl.BlockSpec((TB, D_in), lambda i: (i, 0)),   # x: tiled over batch
            resident(w1b), resident(b1f),
            resident(w2b), resident(b2f),
            resident(w3b), resident(b3f),
        ],
        out_specs=pl.BlockSpec((TB, D_out_p), lambda i: (i, 0)),
        compiler_params=pltpu.CompilerParams(
            dimension_semantics=("parallel",),
        ),
        cost_estimate=pl.CostEstimate(
            flops=flops, bytes_accessed=bytes_accessed, transcendentals=0,
        ),
    )(xp, w1b, b1f, w2b, b2f, w3b, b3f)

    return out[:B, :d_out]


def reference_forward(x, w1, b1, w2, b2, w3, b3):
    # Emulates the kernel's precision: bf16 operands, f32 accumulation.
    f = lambda a: a.astype(jnp.bfloat16)
    h = jnp.maximum(jnp.dot(f(x), f(w1), preferred_element_type=jnp.float32) + b1, 0.0)
    h = jnp.maximum(jnp.dot(f(h), f(w2), preferred_element_type=jnp.float32) + b2, 0.0)
    h = jnp.maximum(jnp.dot(f(h), f(w3), preferred_element_type=jnp.float32) + b3, 0.0)
    return h


if __name__ == "__main__":
    key = jax.random.PRNGKey(0)
    kx, k1, k2, k3, kb1, kb2, kb3 = jax.random.split(key, 7)

    B = 8
    D_IN, D_H1, D_H2, D_OUT = 28 * 28, 256, 64, 10

    x = jax.random.normal(kx, (B, D_IN), dtype=jnp.float32)

    # Deterministic parameter init (Kaiming-uniform-like scaling); stored as (in, out).
    def init_w(k, fan_in, fan_out):
        bound = 1.0 / jnp.sqrt(fan_in)
        return jax.random.uniform(k, (fan_in, fan_out), jnp.float32, -bound, bound)

    def init_b(k, fan_in, fan_out):
        bound = 1.0 / jnp.sqrt(fan_in)
        return jax.random.uniform(k, (1, fan_out), jnp.float32, -bound, bound)

    w1, b1 = init_w(k1, D_IN, D_H1), init_b(kb1, D_IN, D_H1)
    w2, b2 = init_w(k2, D_H1, D_H2), init_b(kb2, D_H1, D_H2)
    w3, b3 = init_w(k3, D_H2, D_OUT), init_b(kb3, D_H2, D_OUT)

    # One-time parameter prep (bf16 weights, lane-padded last layer) — reused per call.
    params = prepare_params(w1, b1, w2, b2, w3, b3)

    out = mlp_forward(x, params)
    out = jax.block_until_ready(out)

    ref = reference_forward(x, w1, b1, w2, b2, w3, b3)
    ref_f32 = jnp.maximum(
        jnp.maximum(jnp.maximum(x @ w1 + b1, 0.0) @ w2 + b2, 0.0) @ w3 + b3, 0.0)

    assert out.shape == (B, D_OUT)
    # Tight check vs bf16-emulating reference, loose check vs pure-f32 reference.
    assert jnp.allclose(out, ref, atol=2e-3, rtol=2e-3)
    assert jnp.allclose(out, ref_f32, atol=5e-2, rtol=5e-2)

    print("KERNEL_OK")
</pallas_src>

<mosaic_0001>
module attributes {stable_mosaic.version = 11 : i64} {
  func.func @mlp_kernel(%arg0: i32, %arg1: memref<16x784xf32, #tpu.memory_space<vmem>>, %arg2: memref<784x256xbf16, #tpu.memory_space<vmem>>, %arg3: memref<1x256xf32, #tpu.memory_space<vmem>>, %arg4: memref<256x64xbf16, #tpu.memory_space<vmem>>, %arg5: memref<1x64xf32, #tpu.memory_space<vmem>>, %arg6: memref<64x128xbf16, #tpu.memory_space<vmem>>, %arg7: memref<1x128xf32, #tpu.memory_space<vmem>>, %arg8: memref<16x128xf32, #tpu.memory_space<vmem>>) attributes {dimension_semantics = [#tpu.dimension_semantics<parallel>], iteration_bounds = array<i64: 1>, scalar_prefetch = 0 : i64, scratch_operands = 0 : i64, tpu.core_type = #tpu.core_type<tc>, window_params = [{transform_indices = @transform_0, window_bounds = array<i64: 16, 784>}, {pipeline_mode = #tpu.pipeline_mode<synchronous>, transform_indices = @transform_1, window_bounds = array<i64: 784, 256>}, {pipeline_mode = #tpu.pipeline_mode<synchronous>, transform_indices = @transform_2, window_bounds = array<i64: 1, 256>}, {pipeline_mode = #tpu.pipeline_mode<synchronous>, transform_indices = @transform_3, window_bounds = array<i64: 256, 64>}, {pipeline_mode = #tpu.pipeline_mode<synchronous>, transform_indices = @transform_4, window_bounds = array<i64: 1, 64>}, {pipeline_mode = #tpu.pipeline_mode<synchronous>, transform_indices = @transform_5, window_bounds = array<i64: 64, 128>}, {pipeline_mode = #tpu.pipeline_mode<synchronous>, transform_indices = @transform_6, window_bounds = array<i64: 1, 128>}, {transform_indices = @transform_7, window_bounds = array<i64: 16, 128>}]} {
    %c0 = arith.constant 0 : index
    %c0_0 = arith.constant 0 : index
    %0 = vector.load %arg1[%c0, %c0_0] : memref<16x784xf32, #tpu.memory_space<vmem>>, vector<16x784xf32>
    %1 = arith.truncf %0 : vector<16x784xf32> to vector<16x784xbf16>
    %c0_1 = arith.constant 0 : index
    %c0_2 = arith.constant 0 : index
    %2 = vector.load %arg2[%c0_1, %c0_2] : memref<784x256xbf16, #tpu.memory_space<vmem>>, vector<784x256xbf16>
    %cst = arith.constant dense<0.000000e+00> : vector<16x256xf32>
    %3 = tpu.matmul %1, %2, %cst {dimension_numbers = #tpu.dot_dimension_numbers<[1], [0], [0], [1], [0, 0, 1, 1], [], []>} : vector<16x784xbf16>, vector<784x256xbf16>, vector<16x256xf32> -> vector<16x256xf32>
    %c0_3 = arith.constant 0 : index
    %c0_4 = arith.constant 0 : index
    %4 = vector.load %arg3[%c0_3, %c0_4] : memref<1x256xf32, #tpu.memory_space<vmem>>, vector<1x256xf32>
    %5 = vector.broadcast %4 : vector<1x256xf32> to vector<16x256xf32>
    %6 = arith.addf %3, %5 : vector<16x256xf32>
    %cst_5 = arith.constant 0.000000e+00 : f32
    %7 = vector.broadcast %cst_5 : f32 to vector<16x256xf32>
    %8 = arith.maximumf %6, %7 : vector<16x256xf32>
    %9 = arith.truncf %8 : vector<16x256xf32> to vector<16x256xbf16>
    %c0_6 = arith.constant 0 : index
    %c0_7 = arith.constant 0 : index
    %10 = vector.load %arg4[%c0_6, %c0_7] : memref<256x64xbf16, #tpu.memory_space<vmem>>, vector<256x64xbf16>
    %cst_8 = arith.constant dense<0.000000e+00> : vector<16x64xf32>
    %11 = tpu.matmul %9, %10, %cst_8 {dimension_numbers = #tpu.dot_dimension_numbers<[1], [0], [0], [1], [0, 0, 1, 1], [], []>} : vector<16x256xbf16>, vector<256x64xbf16>, vector<16x64xf32> -> vector<16x64xf32>
    %c0_9 = arith.constant 0 : index
    %c0_10 = arith.constant 0 : index
    %12 = vector.load %arg5[%c0_9, %c0_10] : memref<1x64xf32, #tpu.memory_space<vmem>>, vector<1x64xf32>
    %13 = vector.broadcast %12 : vector<1x64xf32> to vector<16x64xf32>
    %14 = arith.addf %11, %13 : vector<16x64xf32>
    %cst_11 = arith.constant 0.000000e+00 : f32
    %15 = vector.broadcast %cst_11 : f32 to vector<16x64xf32>
    %16 = arith.maximumf %14, %15 : vector<16x64xf32>
    %17 = arith.truncf %16 : vector<16x64xf32> to vector<16x64xbf16>
    %c0_12 = arith.constant 0 : index
    %c0_13 = arith.constant 0 : index
    %18 = vector.load %arg6[%c0_12, %c0_13] : memref<64x128xbf16, #tpu.memory_space<vmem>>, vector<64x128xbf16>
    %cst_14 = arith.constant dense<0.000000e+00> : vector<16x128xf32>
    %19 = tpu.matmul %17, %18, %cst_14 {dimension_numbers = #tpu.dot_dimension_numbers<[1], [0], [0], [1], [0, 0, 1, 1], [], []>} : vector<16x64xbf16>, vector<64x128xbf16>, vector<16x128xf32> -> vector<16x128xf32>
    %c0_15 = arith.constant 0 : index
    %c0_16 = arith.constant 0 : index
    %20 = vector.load %arg7[%c0_15, %c0_16] : memref<1x128xf32, #tpu.memory_space<vmem>>, vector<1x128xf32>
    %21 = vector.broadcast %20 : vector<1x128xf32> to vector<16x128xf32>
    %22 = arith.addf %19, %21 : vector<16x128xf32>
    %cst_17 = arith.constant 0.000000e+00 : f32
    %23 = vector.broadcast %cst_17 : f32 to vector<16x128xf32>
    %24 = arith.maximumf %22, %23 : vector<16x128xf32>
    %c0_18 = arith.constant 0 : index
    %c0_19 = arith.constant 0 : index
    %25 = vector.load %arg8[%c0_18, %c0_19] : memref<16x128xf32, #tpu.memory_space<vmem>>, vector<16x128xf32>
    tpu.vector_store %arg8[%c0_18, %c0_19], %24 {strides = array<i32>} : memref<16x128xf32, #tpu.memory_space<vmem>>, vector<16x128xf32>,
    return
  }
  func.func @transform_0(%arg0: i32) -> (i32, i32) {
    %c0_i32 = arith.constant 0 : i32
    %c0_i32_0 = arith.constant 0 : i32
    return %arg0, %c0_i32 : i32, i32
  }
  func.func @transform_1(%arg0: i32) -> (i32, i32) {
    %c0_i32 = arith.constant 0 : i32
    %c0_i32_0 = arith.constant 0 : i32
    %c0_i32_1 = arith.constant 0 : i32
    return %c0_i32, %c0_i32_0 : i32, i32
  }
  func.func @transform_2(%arg0: i32) -> (i32, i32) {
    %c0_i32 = arith.constant 0 : i32
    %c0_i32_0 = arith.constant 0 : i32
    %c0_i32_1 = arith.constant 0 : i32
    return %c0_i32, %c0_i32_0 : i32, i32
  }
  func.func @transform_3(%arg0: i32) -> (i32, i32) {
    %c0_i32 = arith.constant 0 : i32
    %c0_i32_0 = arith.constant 0 : i32
    %c0_i32_1 = arith.constant 0 : i32
    return %c0_i32, %c0_i32_0 : i32, i32
  }
  func.func @transform_4(%arg0: i32) -> (i32, i32) {
    %c0_i32 = arith.constant 0 : i32
    %c0_i32_0 = arith.constant 0 : i32
    %c0_i32_1 = arith.constant 0 : i32
    return %c0_i32, %c0_i32_0 : i32, i32
  }
  func.func @transform_5(%arg0: i32) -> (i32, i32) {
    %c0_i32 = arith.constant 0 : i32
    %c0_i32_0 = arith.constant 0 : i32
    %c0_i32_1 = arith.constant 0 : i32
    return %c0_i32, %c0_i32_0 : i32, i32
  }
  func.func @transform_6(%arg0: i32) -> (i32, i32) {
    %c0_i32 = arith.constant 0 : i32
    %c0_i32_0 = arith.constant 0 : i32
    %c0_i32_1 = arith.constant 0 : i32
    return %c0_i32, %c0_i32_0 : i32, i32
  }
  func.func @transform_7(%arg0: i32) -> (i32, i32) {
    %c0_i32 = arith.constant 0 : i32
    %c0_i32_0 = arith.constant 0 : i32
    return %arg0, %c0_i32 : i32, i32
  }
}

</mosaic_0001>

<llo_original>
// kernel: tpu_custom_call.1
$region0: #{tpu_custom_call.1}
  #allocation0 [shape = 'u32[]', space=smem, size = 0x4, offset = 0x4, fixed_abs, tag = 'smem constant byte address 0x4 - core index']
  #allocation1 [shape = 'u32[144,128]{1,0:T(1,128)}', space=vmem, size = 0x12000, scoped, tag = 'internal scratch']
  %s0 = inlined_call_operand.vmem [shape: f32[16,784], index: 0, kind: input, shape index: {}]
  %s1 = inlined_call_operand.hbm [shape: bf16[784,256], index: 1, kind: input, shape index: {}]
  %s2 = inlined_call_operand.vmem [shape: f32[1,256], index: 2, kind: input, shape index: {}]
  %s3 = inlined_call_operand.vmem [shape: bf16[256,64], index: 3, kind: input, shape index: {}]
  %s4 = inlined_call_operand.vmem [shape: f32[1,64], index: 4, kind: input, shape index: {}]
  %s5 = inlined_call_operand.vmem [shape: bf16[64,128], index: 5, kind: input, shape index: {}]
  %s6 = inlined_call_operand.vmem [shape: f32[1,128], index: 6, kind: input, shape index: {}]
  %s7 = inlined_call_operand.hbm [shape: f32[16,128], index: 7, kind: output, shape index: {}]
  %s8 = sld [smem:[#allocation0]]
  $region42: #{tpu_custom_call.1} parent=0
    _
  %s10 = ssub.s32 1, %s8
  %s11 = scalar_select 0, %s10, %s8
  $region1: #{tpu_custom_call.1} parent=0
    #allocation2 [shape = 'u8[401408]{0}', space=vmem, size = 0x62000, scoped, tag = 'input window, operand 1, single buffered']
    #allocation3 [shape = 's32[1]{0}', space=sflag, size = 0x4, scoped, tag = 'scoped memory for tpu_custom_call.1']
    #allocation4 [shape = 's32[1]{0}', space=sflag, size = 0x4, scoped, tag = 'scoped memory for tpu_custom_call.1']
    #allocation5 [shape = 'u8[8192]{0}', space=vmem, size = 0x2000, scoped, tag = 'output window, operand 0, single buffered']
    %12 = vsyncpa [#allocation3], 0
    %13 = vsyncpa [#allocation4], 0
    // Predicated region
    $region2: #{tpu_custom_call.1} parent=1 // pred_check
      _
    $region3: #{tpu_custom_call.1} parent=1 // pred_check_branch
      %15 = sbr.rel (0) target = $region5
    $region4: #{tpu_custom_call.1} parent=1 // pred_region
      _
    $region5: #{tpu_custom_call.1} parent=1 // pred_fallthru
      _
    // Predicated region
    $region6: #{tpu_custom_call.1} parent=1 // pred_check
      _
    $region7: #{tpu_custom_call.1} parent=1 // pred_check_branch
      %17 = sbr.rel (0) target = $region9
    $region8: #{tpu_custom_call.1} parent=1 // pred_region
      %s19 = ssub.s32 12544, 12544
      %20 = vsyncadd [#allocation3], %s19
      %s21 = sshll.u32 [#allocation2], 4
      %s22 = int_to_ptr.vmem [resolvable:$true] %s21
      %27 = dma.hbm_to_vmem [thread:$0]  %s1, 12544, %s22, [#allocation3], 128, 128, 8
    $region9: #{tpu_custom_call.1} parent=1 // pred_fallthru
      _
    // Predicated region
    $region10: #{tpu_custom_call.1} parent=1 // pred_check
      _
    $region11: #{tpu_custom_call.1} parent=1 // pred_check_branch
      %29 = sbr.rel (0) target = $region13
    $region12: #{tpu_custom_call.1} parent=1 // pred_region
      _
    $region13: #{tpu_custom_call.1} parent=1 // pred_fallthru
      _
    // Predicated region
    $region14: #{tpu_custom_call.1} parent=1 // pred_check
      _
    $region15: #{tpu_custom_call.1} parent=1 // pred_check_branch
      %31 = sbr.rel (0) target = $region17
    $region16: #{tpu_custom_call.1} parent=1 // pred_region
      _
    $region17: #{tpu_custom_call.1} parent=1 // pred_fallthru
      _
    // Predicated region
    $region18: #{tpu_custom_call.1} parent=1 // pred_check
      _
    $region19: #{tpu_custom_call.1} parent=1 // pred_check_branch
      %33 = sbr.rel (0) target = $region21
    $region20: #{tpu_custom_call.1} parent=1 // pred_region
      _
    $region21: #{tpu_custom_call.1} parent=1 // pred_fallthru
      _
    // Predicated region
    $region22: #{tpu_custom_call.1} parent=1 // pred_check
      _
    $region23: #{tpu_custom_call.1} parent=1 // pred_check_branch
      %35 = sbr.rel (0) target = $region25
    $region24: #{tpu_custom_call.1} parent=1 // pred_region
      _
    $region25: #{tpu_custom_call.1} parent=1 // pred_fallthru
      _
    // Predicated region
    $region26: #{tpu_custom_call.1} parent=1 // pred_check
      _
    $region27: #{tpu_custom_call.1} parent=1 // pred_check_branch
      %37 = sbr.rel (0) target = $region29
    $region28: #{tpu_custom_call.1} parent=1 // pred_region
      _
    $region29: #{tpu_custom_call.1} parent=1 // pred_fallthru
      _
    // Predicated region
    $region30: #{tpu_custom_call.1} parent=1 // pred_check
      _
    $region31: #{tpu_custom_call.1} parent=1 // pred_check_branch
      %39 = sbr.rel (0) target = $region33
    $region32: #{tpu_custom_call.1} parent=1 // pred_region
      %40 = dma.done [#allocation3], 12544
    $region33: #{tpu_custom_call.1} parent=1 // pred_fallthru
      _
    %v42 = vld [vmem:[%s0] sm:$0xff]
    %v43 = vld [vmem:[%s0 + $0x8] sm:$0xff]
    %v44 = vld [vmem:[%s0 + $0x10] sm:$0xff]
    %v45 = vld [vmem:[%s0 + $0x18] sm:$0xff]
    %v46 = vld [vmem:[%s0 + $0x20] sm:$0xff]
    %v47 = vld [vmem:[%s0 + $0x28] sm:$0xff]
    %v48 = vld [vmem:[%s0 + $0x30] sm:$0xff]
    %v49 = vld [vmem:[%s0 + $0x38] sm:$0xff]
    %v50 = vld [vmem:[%s0 + $0x40] sm:$0xff]
    %v51 = vld [vmem:[%s0 + $0x48] sm:$0xff]
    %v52 = vld [vmem:[%s0 + $0x50] sm:$0xff]
    %v53 = vld [vmem:[%s0 + $0x58] sm:$0xff]
    %v54 = vld [vmem:[%s0 + $0x60] sm:$0xff]
    %v55 = vld [vmem:[%s0 + $0x68] sm:$0xff]
    %v56 = vpack.c.bf16 %v49, %v42
    %v57 = vpack.c.bf16 %v50, %v43
    %v58 = vpack.c.bf16 %v51, %v44
    %v59 = vpack.c.bf16 %v52, %v45
    %v60 = vpack.c.bf16 %v53, %v46
    %v61 = vpack.c.bf16 %v54, %v47
    %v62 = vpack.c.bf16 %v55, %v48
    %v63 = vld [vmem:[#allocation2] sm:$0xff]
    %v64 = vld [vmem:[#allocation2 + $0x8] sm:$0xff]
    %v65 = vld [vmem:[#allocation2 + $0x10] sm:$0xff]
    %v66 = vld [vmem:[#allocation2 + $0x18] sm:$0xff]
    %v67 = vld [vmem:[#allocation2 + $0x20] sm:$0xff]
    %v68 = vld [vmem:[#allocation2 + $0x28] sm:$0xff]
    %v69 = vld [vmem:[#allocation2 + $0x30] sm:$0xff]
    %v70 = vld [vmem:[#allocation2 + $0x38] sm:$0xff]
    %v71 = vld [vmem:[#allocation2 + $0x40] sm:$0xff]
    %v72 = vld [vmem:[#allocation2 + $0x48] sm:$0xff]
    %v73 = vld [vmem:[#allocation2 + $0x50] sm:$0xff]
    %v74 = vld [vmem:[#allocation2 + $0x58] sm:$0xff]
    %v75 = vld [vmem:[#allocation2 + $0x60] sm:$0xff]
    %v76 = vld [vmem:[#allocation2 + $0x68] sm:$0xff]
    %v77 = vld [vmem:[#allocation2 + $0x70] sm:$0xff]
    %v78 = vld [vmem:[#allocation2 + $0x78] sm:$0xff]
    %v79 = vld [vmem:[#allocation2 + $0x80] sm:$0xff]
    %v80 = vld [vmem:[#allocation2 + $0x88] sm:$0xff]
    %v81 = vld [vmem:[#allocation2 + $0x90] sm:$0xff]
    %v82 = vld [vmem:[#allocation2 + $0x98] sm:$0xff]
    %v83 = vld [vmem:[#allocation2 + $0xa0] sm:$0xff]
    %v84 = vld [vmem:[#allocation2 + $0xa8] sm:$0xff]
    %v85 = vld [vmem:[#allocation2 + $0xb0] sm:$0xff]
    %v86 = vld [vmem:[#allocation2 + $0xb8] sm:$0xff]
    %v87 = vld [vmem:[#allocation2 + $0xc0] sm:$0xff]
    %v88 = vld [vmem:[#allocation2 + $0xc8] sm:$0xff]
    %v89 = vld [vmem:[#allocation2 + $0xd0] sm:$0xff]
    %v90 = vld [vmem:[#allocation2 + $0xd8] sm:$0xff]
    %v91 = vld [vmem:[#allocation2 + $0xe0] sm:$0xff]
    %v92 = vld [vmem:[#allocation2 + $0xe8] sm:$0xff]
    %v93 = vld [vmem:[#allocation2 + $0xf0] sm:$0xff]
    %v94 = vld [vmem:[#allocation2 + $0xf8] sm:$0xff]
    %v95 = vld [vmem:[#allocation2 + $0x100] sm:$0xff]
    %v96 = vld [vmem:[#allocation2 + $0x108] sm:$0xff]
    %v97 = vld [vmem:[#allocation2 + $0x110] sm:$0xff]
    %v98 = vld [vmem:[#allocation2 + $0x118] sm:$0xff]
    %v99 = vld [vmem:[#allocation2 + $0x120] sm:$0xff]
    %v100 = vld [vmem:[#allocation2 + $0x128] sm:$0xff]
    %v101 = vld [vmem:[#allocation2 + $0x130] sm:$0xff]
    %v102 = vld [vmem:[#allocation2 + $0x138] sm:$0xff]
    %v103 = vld [vmem:[#allocation2 + $0x140] sm:$0xff]
    %v104 = vld [vmem:[#allocation2 + $0x148] sm:$0xff]
    %v105 = vld [vmem:[#allocation2 + $0x150] sm:$0xff]
    %v106 = vld [vmem:[#allocation2 + $0x158] sm:$0xff]
    %v107 = vld [vmem:[#allocation2 + $0x160] sm:$0xff]
    %v108 = vld [vmem:[#allocation2 + $0x168] sm:$0xff]
    %v109 = vld [vmem:[#allocation2 + $0x170] sm:$0xff]
    %v110 = vld [vmem:[#allocation2 + $0x178] sm:$0xff]
    %v111 = vld [vmem:[#allocation2 + $0x180] sm:$0xff]
    %v112 = vld [vmem:[#allocation2 + $0x188] sm:$0xff]
    %v113 = vld [vmem:[#allocation2 + $0x190] sm:$0xff]
    %v114 = vld [vmem:[#allocation2 + $0x198] sm:$0xff]
    %v115 = vld [vmem:[#allocation2 + $0x1a0] sm:$0xff]
    %v116 = vld [vmem:[#allocation2 + $0x1a8] sm:$0xff]
    %v117 = vld [vmem:[#allocation2 + $0x1b0] sm:$0xff]
    %v118 = vld [vmem:[#allocation2 + $0x1b8] sm:$0xff]
    %v119 = vld [vmem:[#allocation2 + $0x1c0] sm:$0xff]
    %v120 = vld [vmem:[#allocation2 + $0x1c8] sm:$0xff]
    %v121 = vld [vmem:[#allocation2 + $0x1d0] sm:$0xff]
    %v122 = vld [vmem:[#allocation2 + $0x1d8] sm:$0xff]
    %v123 = vld [vmem:[#allocation2 + $0x1e0] sm:$0xff]
    %v124 = vld [vmem:[#allocation2 + $0x1e8] sm:$0xff]
    %v125 = vld [vmem:[#allocation2 + $0x1f0] sm:$0xff]
    %v126 = vld [vmem:[#allocation2 + $0x1f8] sm:$0xff]
    %v127 = vld [vmem:[#allocation2 + $0x200] sm:$0xff]
    %v128 = vld [vmem:[#allocation2 + $0x208] sm:$0xff]
    %v129 = vld [vmem:[#allocation2 + $0x210] sm:$0xff]
    %v130 = vld [vmem:[#allocation2 + $0x218] sm:$0xff]
    %v131 = vld [vmem:[#allocation2 + $0x220] sm:$0xff]
    %v132 = vld [vmem:[#allocation2 + $0x228] sm:$0xff]
    %v133 = vld [vmem:[#allocation2 + $0x230] sm:$0xff]
    %v134 = vld [vmem:[#allocation2 + $0x238] sm:$0xff]
    %v135 = vld [vmem:[#allocation2 + $0x240] sm:$0xff]
    %v136 = vld [vmem:[#allocation2 + $0x248] sm:$0xff]
    %v137 = vld [vmem:[#allocation2 + $0x250] sm:$0xff]
    %v138 = vld [vmem:[#allocation2 + $0x258] sm:$0xff]
    %v139 = vld [vmem:[#allocation2 + $0x260] sm:$0xff]
    %v140 = vld [vmem:[#allocation2 + $0x268] sm:$0xff]
    %v141 = vld [vmem:[#allocation2 + $0x270] sm:$0xff]
    %v142 = vld [vmem:[#allocation2 + $0x278] sm:$0xff]
    %v143 = vld [vmem:[#allocation2 + $0x280] sm:$0xff]
    %v144 = vld [vmem:[#allocation2 + $0x288] sm:$0xff]
    %v145 = vld [vmem:[#allocation2 + $0x290] sm:$0xff]
    %v146 = vld [vmem:[#allocation2 + $0x298] sm:$0xff]
    %v147 = vld [vmem:[#allocation2 + $0x2a0] sm:$0xff]
    %v148 = vld [vmem:[#allocation2 + $0x2a8] sm:$0xff]
    %v149 = vld [vmem:[#allocation2 + $0x2b0] sm:$0xff]
    %v150 = vld [vmem:[#allocation2 + $0x2b8] sm:$0xff]
    %v151 = vld [vmem:[#allocation2 + $0x2c0] sm:$0xff]
    %v152 = vld [vmem:[#allocation2 + $0x2c8] sm:$0xff]
    %v153 = vld [vmem:[#allocation2 + $0x2d0] sm:$0xff]
    %v154 = vld [vmem:[#allocation2 + $0x2d8] sm:$0xff]
    %v155 = vld [vmem:[#allocation2 + $0x2e0] sm:$0xff]
    %v156 = vld [vmem:[#allocation2 + $0x2e8] sm:$0xff]
    %v157 = vld [vmem:[#allocation2 + $0x2f0] sm:$0xff]
    %v158 = vld [vmem:[#allocation2 + $0x2f8] sm:$0xff]
    %v159 = vld [vmem:[#allocation2 + $0x300] sm:$0xff]
    %v160 = vld [vmem:[#allocation2 + $0x308] sm:$0xff]
    %v161 = vld [vmem:[%s2] sm:$0x3]
    %v163 = vlaneseq
    %v164 = vshrl.u32 %v163, 7
    %v165 = vsub.s32 0, %v164
    %v166 = vrot.slane %v161, %v165
    %v167 = vlaneseq
    %v168 = vshrl.u32 %v167, 7
    %v169 = vsub.s32 1, %v168
    %v170 = vrot.slane %v161, %v169
    %v271 = vunpack.c.l.b16 %v63
    %v272 = vunpack.c.h.b16 %v63
    %v273 = vunpack.c.l.b16 %v64
    %v274 = vunpack.c.h.b16 %v64
    %v275 = vunpack.c.l.b16 %v65
    %v276 = vunpack.c.h.b16 %v65
    %v277 = vunpack.c.l.b16 %v66
    %v278 = vunpack.c.h.b16 %v66
    %v279 = vunpack.c.l.b16 %v67
    %v280 = vunpack.c.h.b16 %v67
    %v281 = vunpack.c.l.b16 %v68
    %v282 = vunpack.c.h.b16 %v68
    %v283 = vunpack.c.l.b16 %v69
    %v284 = vunpack.c.h.b16 %v69
    %v285 = vunpack.c.l.b16 %v70
    %v286 = vunpack.c.h.b16 %v70
    %v287 = vunpack.c.l.b16 %v71
    %v288 = vunpack.c.h.b16 %v71
    %v289 = vunpack.c.l.b16 %v72
    %v290 = vunpack.c.h.b16 %v72
    %v291 = vunpack.c.l.b16 %v73
    %v292 = vunpack.c.h.b16 %v73
    %v293 = vunpack.c.l.b16 %v74
    %v294 = vunpack.c.h.b16 %v74
    %v295 = vunpack.c.l.b16 %v75
    %v296 = vunpack.c.h.b16 %v75
    %v297 = vunpack.c.l.b16 %v76
    %v298 = vunpack.c.h.b16 %v76
    %v299 = vunpack.c.l.b16 %v77
    %v300 = vunpack.c.h.b16 %v77
    %v301 = vunpack.c.l.b16 %v78
    %v302 = vunpack.c.h.b16 %v78
    %v303 = vunpack.c.l.b16 %v79
    %v304 = vunpack.c.h.b16 %v79
    %v305 = vunpack.c.l.b16 %v80
    %v306 = vunpack.c.h.b16 %v80
    %v307 = vunpack.c.l.b16 %v81
    %v308 = vunpack.c.h.b16 %v81
    %v309 = vunpack.c.l.b16 %v82
    %v310 = vunpack.c.h.b16 %v82
    %v311 = vunpack.c.l.b16 %v83
    %v312 = vunpack.c.h.b16 %v83
    %v313 = vunpack.c.l.b16 %v84
    %v314 = vunpack.c.h.b16 %v84
    %v315 = vunpack.c.l.b16 %v85
    %v316 = vunpack.c.h.b16 %v85
    %v317 = vunpack.c.l.b16 %v86
    %v318 = vunpack.c.h.b16 %v86
    %v319 = vunpack.c.l.b16 %v87
    %v320 = vunpack.c.h.b16 %v87
    %v321 = vunpack.c.l.b16 %v88
    %v322 = vunpack.c.h.b16 %v88
    %v323 = vunpack.c.l.b16 %v89
    %v324 = vunpack.c.h.b16 %v89
    %v325 = vunpack.c.l.b16 %v90
    %v326 = vunpack.c.h.b16 %v90
    %v327 = vunpack.c.l.b16 %v91
    %v328 = vunpack.c.h.b16 %v91
    %v329 = vunpack.c.l.b16 %v92
    %v330 = vunpack.c.h.b16 %v92
    %v331 = vunpack.c.l.b16 %v93
    %v332 = vunpack.c.h.b16 %v93
    %v333 = vunpack.c.l.b16 %v94
    %v334 = vunpack.c.h.b16 %v94
    %v335 = vunpack.c.l.b16 %v95
    %v336 = vunpack.c.h.b16 %v95
    %v337 = vunpack.c.l.b16 %v96
    %v338 = vunpack.c.h.b16 %v96
    %v339 = vunpack.c.l.b16 %v97
    %v340 = vunpack.c.h.b16 %v97
    %v341 = vunpack.c.l.b16 %v98
    %v342 = vunpack.c.h.b16 %v98
    %v343 = vunpack.c.l.b16 %v99
    %v344 = vunpack.c.h.b16 %v99
    %v345 = vunpack.c.l.b16 %v100
    %v346 = vunpack.c.h.b16 %v100
    %v347 = vunpack.c.l.b16 %v101
    %v348 = vunpack.c.h.b16 %v101
    %v349 = vunpack.c.l.b16 %v102
    %v350 = vunpack.c.h.b16 %v102
    %v351 = vunpack.c.l.b16 %v103
    %v352 = vunpack.c.h.b16 %v103
    %v353 = vunpack.c.l.b16 %v104
    %v354 = vunpack.c.h.b16 %v104
    %v355 = vunpack.c.l.b16 %v105
    %v356 = vunpack.c.h.b16 %v105
    %v357 = vunpack.c.l.b16 %v106
    %v358 = vunpack.c.h.b16 %v106
    %v359 = vunpack.c.l.b16 %v107
    %v360 = vunpack.c.h.b16 %v107
    %v361 = vunpack.c.l.b16 %v108
    %v362 = vunpack.c.h.b16 %v108
    %v363 = vunpack.c.l.b16 %v109
    %v364 = vunpack.c.h.b16 %v109
    %v365 = vunpack.c.l.b16 %v110
    %v366 = vunpack.c.h.b16 %v110
    %v367 = vunpack.c.l.b16 %v111
    %v368 = vunpack.c.h.b16 %v111
    %v369 = vunpack.c.l.b16 %v112
    %v370 = vunpack.c.h.b16 %v112
    %v371 = vunpack.c.l.b16 %v113
    %v372 = vunpack.c.h.b16 %v113
    %v373 = vunpack.c.l.b16 %v114
    %v374 = vunpack.c.h.b16 %v114
    %v375 = vunpack.c.l.b16 %v115
    %v376 = vunpack.c.h.b16 %v115
    %v377 = vunpack.c.l.b16 %v116
    %v378 = vunpack.c.h.b16 %v116
    %v379 = vunpack.c.l.b16 %v117
    %v380 = vunpack.c.h.b16 %v117
    %v381 = vunpack.c.l.b16 %v118
    %v382 = vunpack.c.h.b16 %v118
    %v383 = vunpack.c.l.b16 %v119
    %v384 = vunpack.c.h.b16 %v119
    %v385 = vunpack.c.l.b16 %v120
    %v386 = vunpack.c.h.b16 %v120
    %v387 = vunpack.c.l.b16 %v121
    %v388 = vunpack.c.h.b16 %v121
    %v389 = vunpack.c.l.b16 %v122
    %v390 = vunpack.c.h.b16 %v122
    %v391 = vunpack.c.l.b16 %v123
    %v392 = vunpack.c.h.b16 %v123
    %v393 = vunpack.c.l.b16 %v124
    %v394 = vunpack.c.h.b16 %v124
    %v395 = vunpack.c.l.b16 %v125
    %v396 = vunpack.c.h.b16 %v125
    %v397 = vunpack.c.l.b16 %v126
    %v398 = vunpack.c.h.b16 %v126
    %v399 = vunpack.c.l.b16 %v127
    %v400 = vunpack.c.h.b16 %v127
    %v401 = vunpack.c.l.b16 %v128
    %v402 = vunpack.c.h.b16 %v128
    %v403 = vunpack.c.l.b16 %v129
    %v404 = vunpack.c.h.b16 %v129
    %v405 = vunpack.c.l.b16 %v130
    %v406 = vunpack.c.h.b16 %v130
    %v407 = vunpack.c.l.b16 %v131
    %v408 = vunpack.c.h.b16 %v131
    %v409 = vunpack.c.l.b16 %v132
    %v410 = vunpack.c.h.b16 %v132
    %v411 = vunpack.c.l.b16 %v133
    %v412 = vunpack.c.h.b16 %v133
    %v413 = vunpack.c.l.b16 %v134
    %v414 = vunpack.c.h.b16 %v134
    %v415 = vunpack.c.l.b16 %v135
    %v416 = vunpack.c.h.b16 %v135
    %v417 = vunpack.c.l.b16 %v136
    %v418 = vunpack.c.h.b16 %v136
    %v419 = vunpack.c.l.b16 %v137
    %v420 = vunpack.c.h.b16 %v137
    %v421 = vunpack.c.l.b16 %v138
    %v422 = vunpack.c.h.b16 %v138
    %v423 = vunpack.c.l.b16 %v139
    %v424 = vunpack.c.h.b16 %v139
    %v425 = vunpack.c.l.b16 %v140
    %v426 = vunpack.c.h.b16 %v140
    %v427 = vunpack.c.l.b16 %v141
    %v428 = vunpack.c.h.b16 %v141
    %v429 = vunpack.c.l.b16 %v142
    %v430 = vunpack.c.h.b16 %v142
    %v431 = vunpack.c.l.b16 %v143
    %v432 = vunpack.c.h.b16 %v143
    %v433 = vunpack.c.l.b16 %v144
    %v434 = vunpack.c.h.b16 %v144
    %v435 = vunpack.c.l.b16 %v145
    %v436 = vunpack.c.h.b16 %v145
    %v437 = vunpack.c.l.b16 %v146
    %v438 = vunpack.c.h.b16 %v146
    %v439 = vunpack.c.l.b16 %v147
    %v440 = vunpack.c.h.b16 %v147
    %v441 = vunpack.c.l.b16 %v148
    %v442 = vunpack.c.h.b16 %v148
    %v443 = vunpack.c.l.b16 %v149
    %v444 = vunpack.c.h.b16 %v149
    %v445 = vunpack.c.l.b16 %v150
    %v446 = vunpack.c.h.b16 %v150
    %v447 = vunpack.c.l.b16 %v151
    %v448 = vunpack.c.h.b16 %v151
    %v449 = vunpack.c.l.b16 %v152
    %v450 = vunpack.c.h.b16 %v152
    %v451 = vunpack.c.l.b16 %v153
    %v452 = vunpack.c.h.b16 %v153
    %v453 = vunpack.c.l.b16 %v154
    %v454 = vunpack.c.h.b16 %v154
    %v455 = vunpack.c.l.b16 %v155
    %v456 = vunpack.c.h.b16 %v155
    %v457 = vunpack.c.l.b16 %v156
    %v458 = vunpack.c.h.b16 %v156
    %v459 = vunpack.c.l.b16 %v157
    %v460 = vunpack.c.h.b16 %v157
    %v461 = vunpack.c.l.b16 %v158
    %v462 = vunpack.c.h.b16 %v158
    %v463 = vunpack.c.l.b16 %v159
    %v464 = vunpack.c.h.b16 %v159
    %v465 = vunpack.c.l.b16 %v160
    %v466 = vunpack.c.h.b16 %v160
    %v467 = vpack.c.b16 %v273, %v271
    %v468 = vpack.c.b16 %v274, %v272
    %v469 = vpack.c.b16 %v277, %v275
    %v470 = vpack.c.b16 %v278, %v276
    %v471 = vpack.c.b16 %v281, %v279
    %v472 = vpack.c.b16 %v282, %v280
    %v473 = vpack.c.b16 %v285, %v283
    %v474 = vpack.c.b16 %v286, %v284
    %v475 = vpack.c.b16 %v289, %v287
    %v476 = vpack.c.b16 %v290, %v288
    %v477 = vpack.c.b16 %v293, %v291
    %v478 = vpack.c.b16 %v294, %v292
    %v479 = vpack.c.b16 %v297, %v295
    %v480 = vpack.c.b16 %v298, %v296
    %v481 = vpack.c.b16 %v301, %v299
    %v482 = vpack.c.b16 %v302, %v300
    %v483 = vpack.c.b16 %v305, %v303
    %v484 = vpack.c.b16 %v306, %v304
    %v485 = vpack.c.b16 %v309, %v307
    %v486 = vpack.c.b16 %v310, %v308
    %v487 = vpack.c.b16 %v313, %v311
    %v488 = vpack.c.b16 %v314, %v312
    %v489 = vpack.c.b16 %v317, %v315
    %v490 = vpack.c.b16 %v318, %v316
    %v491 = vpack.c.b16 %v321, %v319
    %v492 = vpack.c.b16 %v322, %v320
    %v493 = vpack.c.b16 %v325, %v323
    %v494 = vpack.c.b16 %v326, %v324
    %v495 = vpack.c.b16 %v329, %v327
    %v496 = vpack.c.b16 %v330, %v328
    %v497 = vpack.c.b16 %v333, %v331
    %v498 = vpack.c.b16 %v334, %v332
    %v499 = vpack.c.b16 %v337, %v335
    %v500 = vpack.c.b16 %v338, %v336
    %v501 = vpack.c.b16 %v341, %v339
    %v502 = vpack.c.b16 %v342, %v340
    %v503 = vpack.c.b16 %v345, %v343
    %v504 = vpack.c.b16 %v346, %v344
    %v505 = vpack.c.b16 %v349, %v347
    %v506 = vpack.c.b16 %v350, %v348
    %v507 = vpack.c.b16 %v353, %v351
    %v508 = vpack.c.b16 %v354, %v352
    %v509 = vpack.c.b16 %v357, %v355
    %v510 = vpack.c.b16 %v358, %v356
    %v511 = vpack.c.b16 %v361, %v359
    %v512 = vpack.c.b16 %v362, %v360
    %v513 = vpack.c.b16 %v365, %v363
    %v514 = vpack.c.b16 %v366, %v364
    %v515 = vpack.c.b16 %v369, %v367
    %v516 = vpack.c.b16 %v370, %v368
    %v517 = vpack.c.b16 %v373, %v371
    %v518 = vpack.c.b16 %v374, %v372
    %v519 = vpack.c.b16 %v377, %v375
    %v520 = vpack.c.b16 %v378, %v376
    %v521 = vpack.c.b16 %v381, %v379
    %v522 = vpack.c.b16 %v382, %v380
    %v523 = vpack.c.b16 %v385, %v383
    %v524 = vpack.c.b16 %v386, %v384
    %v525 = vpack.c.b16 %v389, %v387
    %v526 = vpack.c.b16 %v390, %v388
    %v527 = vpack.c.b16 %v393, %v391
    %v528 = vpack.c.b16 %v394, %v392
    %v529 = vpack.c.b16 %v397, %v395
    %v530 = vpack.c.b16 %v398, %v396
    %v531 = vpack.c.b16 %v401, %v399
    %v532 = vpack.c.b16 %v402, %v400
    %v533 = vpack.c.b16 %v405, %v403
    %v534 = vpack.c.b16 %v406, %v404
    %v535 = vpack.c.b16 %v409, %v407
    %v536 = vpack.c.b16 %v410, %v408
    %v537 = vpack.c.b16 %v413, %v411
    %v538 = vpack.c.b16 %v414, %v412
    %v539 = vpack.c.b16 %v417, %v415
    %v540 = vpack.c.b16 %v418, %v416
    %v541 = vpack.c.b16 %v421, %v419
    %v542 = vpack.c.b16 %v422, %v420
    %v543 = vpack.c.b16 %v425, %v423
    %v544 = vpack.c.b16 %v426, %v424
    %v545 = vpack.c.b16 %v429, %v427
    %v546 = vpack.c.b16 %v430, %v428
    %v547 = vpack.c.b16 %v433, %v431
    %v548 = vpack.c.b16 %v434, %v432
    %v549 = vpack.c.b16 %v437, %v435
    %v550 = vpack.c.b16 %v438, %v436
    %v551 = vpack.c.b16 %v441, %v439
    %v552 = vpack.c.b16 %v442, %v440
    %v553 = vpack.c.b16 %v445, %v443
    %v554 = vpack.c.b16 %v446, %v444
    %v555 = vpack.c.b16 %v449, %v447
    %v556 = vpack.c.b16 %v450, %v448
    %v557 = vpack.c.b16 %v453, %v451
    %v558 = vpack.c.b16 %v454, %v452
    %v559 = vpack.c.b16 %v457, %v455
    %v560 = vpack.c.b16 %v458, %v456
    %v561 = vpack.c.b16 %v461, %v459
    %v562 = vpack.c.b16 %v462, %v460
    %v563 = vpack.c.b16 %v465, %v463
    %v564 = vpack.c.b16 %v466, %v464
    %vm663 = vcmask 130048
    %v665 = vsel %vm663, %v62, 0
    %667 = vmatprep.subr.bf16.mxu0 %v468
    %668 = vmatpush1.bf16.msra.mxu0 %v467
    %669 = vmatprep.subr.bf16.mxu0 %v470
    %670 = vmatpush1.bf16.msra.mxu0 %v469
    %671 = vmatprep.subr.bf16.mxu0 %v472
    %672 = vmatpush1.bf16.msra.mxu0 %v471
    %673 = vmatprep.subr.bf16.mxu0 %v474
    %674 = vmatpush1.bf16.msra.mxu0 %v473
    %675 = vmatprep.subr.bf16.mxu0 %v476
    %676 = vmatpush1.bf16.msra.mxu0 %v475
    %677 = vmatprep.subr.bf16.mxu0 %v478
    %678 = vmatpush1.bf16.msra.mxu0 %v477
    %679 = vmatprep.subr.bf16.mxu0 %v480
    %680 = vmatpush1.bf16.msra.mxu0 %v479
    %681 = vmatprep.subr.bf16.mxu0 %v482
    %682 = vmatpush1.bf16.msra.mxu0 %v481
    %683 = vmatprep.subr.bf16.mxu0 %v484
    %684 = vmatpush1.bf16.msra.mxu0 %v483
    %685 = vmatprep.subr.bf16.mxu0 %v486
    %686 = vmatpush1.bf16.msra.mxu0 %v485
    %687 = vmatprep.subr.bf16.mxu0 %v488
    %688 = vmatpush1.bf16.msra.mxu0 %v487
    %689 = vmatprep.subr.bf16.mxu0 %v490
    %690 = vmatpush1.bf16.msra.mxu0 %v489
    %691 = vmatprep.subr.bf16.mxu0 %v492
    %692 = vmatpush1.bf16.msra.mxu0 %v491
    %693 = vmatprep.subr.bf16.mxu0 %v494
    %694 = vmatpush1.bf16.msra.mxu0 %v493
    %695 = vmatprep.subr.bf16.mxu0 %v496
    %696 = vmatpush1.bf16.msra.mxu0 %v495
    %697 = vmatprep.subr.bf16.mxu0 %v498
    %698 = vmatpush1.bf16.msra.mxu0 %v497
    %699 = vmatprep.mubr.bf16.mxu0 %v57
    %700 = vmatmul.mubr.bf16.gmra.mrb[0].mxu0 %v56
    %v701 = vpop.f32.mrb[0].mxu0
    %v702 = vadd.f32 %v166, %v701
    %v703 = vpop.f32.mrb[0].mxu0
    %v704 = vadd.f32 %v170, %v703
    %v705 = vpop.f32.mrb[0].mxu0
    %v706 = vadd.f32 %v166, %v705
    %v707 = vpop.f32.mrb[0].mxu0
    %v708 = vadd.f32 %v170, %v707
    %709 = vdwg.mxu0
    %710 = vmatprep.subr.bf16.mxu0 %v500
    %711 = vmatpush1.bf16.msra.mxu0 %v499
    %712 = vmatprep.subr.bf16.mxu0 %v502
    %713 = vmatpush1.bf16.msra.mxu0 %v501
    %714 = vmatprep.subr.bf16.mxu0 %v504
    %715 = vmatpush1.bf16.msra.mxu0 %v503
    %716 = vmatprep.subr.bf16.mxu0 %v506
    %717 = vmatpush1.bf16.msra.mxu0 %v505
    %718 = vmatprep.subr.bf16.mxu0 %v508
    %719 = vmatpush1.bf16.msra.mxu0 %v507
    %720 = vmatprep.subr.bf16.mxu0 %v510
    %721 = vmatpush1.bf16.msra.mxu0 %v509
    %722 = vmatprep.subr.bf16.mxu0 %v512
    %723 = vmatpush1.bf16.msra.mxu0 %v511
    %724 = vmatprep.subr.bf16.mxu0 %v514
    %725 = vmatpush1.bf16.msra.mxu0 %v513
    %726 = vmatprep.subr.bf16.mxu0 %v516
    %727 = vmatpush1.bf16.msra.mxu0 %v515
    %728 = vmatprep.subr.bf16.mxu0 %v518
    %729 = vmatpush1.bf16.msra.mxu0 %v517
    %730 = vmatprep.subr.bf16.mxu0 %v520
    %731 = vmatpush1.bf16.msra.mxu0 %v519
    %732 = vmatprep.subr.bf16.mxu0 %v522
    %733 = vmatpush1.bf16.msra.mxu0 %v521
    %734 = vmatprep.subr.bf16.mxu0 %v524
    %735 = vmatpush1.bf16.msra.mxu0 %v523
    %736 = vmatprep.subr.bf16.mxu0 %v526
    %737 = vmatpush1.bf16.msra.mxu0 %v525
    %738 = vmatprep.subr.bf16.mxu0 %v528
    %739 = vmatpush1.bf16.msra.mxu0 %v527
    %740 = vmatprep.subr.bf16.mxu0 %v530
    %741 = vmatpush1.bf16.msra.mxu0 %v529
    %742 = vmatprep.mubr.bf16.mxu0 %v59
    %743 = vmatmul.mubr.bf16.gmra.mrb[0].mxu0 %v58
    %v744 = vpop.f32.mrb[0].mxu0
    %v745 = vadd.f32 %v702, %v744
    %v746 = vpop.f32.mrb[0].mxu0
    %v747 = vadd.f32 %v704, %v746
    %v748 = vpop.f32.mrb[0].mxu0
    %v749 = vadd.f32 %v706, %v748
    %v750 = vpop.f32.mrb[0].mxu0
    %v751 = vadd.f32 %v708, %v750
    %752 = vdwg.mxu0
    %753 = vmatprep.subr.bf16.mxu0 %v532
    %754 = vmatpush1.bf16.msra.mxu0 %v531
    %755 = vmatprep.subr.bf16.mxu0 %v534
    %756 = vmatpush1.bf16.msra.mxu0 %v533
    %757 = vmatprep.subr.bf16.mxu0 %v536
    %758 = vmatpush1.bf16.msra.mxu0 %v535
    %759 = vmatprep.subr.bf16.mxu0 %v538
    %760 = vmatpush1.bf16.msra.mxu0 %v537
    %761 = vmatprep.subr.bf16.mxu0 %v540
    %762 = vmatpush1.bf16.msra.mxu0 %v539
    %763 = vmatprep.subr.bf16.mxu0 %v542
    %764 = vmatpush1.bf16.msra.mxu0 %v541
    %765 = vmatprep.subr.bf16.mxu0 %v544
    %766 = vmatpush1.bf16.msra.mxu0 %v543
    %767 = vmatprep.subr.bf16.mxu0 %v546
    %768 = vmatpush1.bf16.msra.mxu0 %v545
    %769 = vmatprep.subr.bf16.mxu0 %v548
    %770 = vmatpush1.bf16.msra.mxu0 %v547
    %771 = vmatprep.subr.bf16.mxu0 %v550
    %772 = vmatpush1.bf16.msra.mxu0 %v549
    %773 = vmatprep.subr.bf16.mxu0 %v552
    %774 = vmatpush1.bf16.msra.mxu0 %v551
    %775 = vmatprep.subr.bf16.mxu0 %v554
    %776 = vmatpush1.bf16.msra.mxu0 %v553
    %777 = vmatprep.subr.bf16.mxu0 %v556
    %778 = vmatpush1.bf16.msra.mxu0 %v555
    %779 = vmatprep.subr.bf16.mxu0 %v558
    %780 = vmatpush1.bf16.msra.mxu0 %v557
    %781 = vmatprep.subr.bf16.mxu0 %v560
    %782 = vmatpush1.bf16.msra.mxu0 %v559
    %783 = vmatprep.subr.bf16.mxu0 %v562
    %784 = vmatpush1.bf16.msra.mxu0 %v561
    %785 = vmatprep.mubr.bf16.mxu0 %v61
    %786 = vmatmul.mubr.bf16.gmra.mrb[0].mxu0 %v60
    %v787 = vpop.f32.mrb[0].mxu0
    %v788 = vadd.f32 %v745, %v787
    %v789 = vpop.f32.mrb[0].mxu0
    %v790 = vadd.f32 %v747, %v789
    %v791 = vpop.f32.mrb[0].mxu0
    %v792 = vadd.f32 %v749, %v791
    %v793 = vpop.f32.mrb[0].mxu0
    %v794 = vadd.f32 %v751, %v793
    %795 = vdwg.mxu0
    %796 = vmatprep.subr.bf16.mxu0 %v564
    %797 = vmatpush1.bf16.msra.mxu0 %v563
    %798 = vmatprep.subr.bf16.mxu0 0
    %799 = vmatpush1.bf16.msra.mxu0 0
    %800 = vmatprep.subr.bf16.mxu0 0
    %801 = vmatpush1.bf16.msra.mxu0 0
    %802 = vmatprep.subr.bf16.mxu0 0
    %803 = vmatpush1.bf16.msra.mxu0 0
    %804 = vmatprep.subr.bf16.mxu0 0
    %805 = vmatpush1.bf16.msra.mxu0 0
    %806 = vmatprep.subr.bf16.mxu0 0
    %807 = vmatpush1.bf16.msra.mxu0 0
    %808 = vmatprep.subr.bf16.mxu0 0
    %809 = vmatpush1.bf16.msra.mxu0 0
    %810 = vmatprep.subr.bf16.mxu0 0
    %811 = vmatpush1.bf16.msra.mxu0 0
    %812 = vmatprep.subr.bf16.mxu0 0
    %813 = vmatpush1.bf16.msra.mxu0 0
    %814 = vmatprep.subr.bf16.mxu0 0
    %815 = vmatpush1.bf16.msra.mxu0 0
    %816 = vmatprep.subr.bf16.mxu0 0
    %817 = vmatpush1.bf16.msra.mxu0 0
    %818 = vmatprep.subr.bf16.mxu0 0
    %819 = vmatpush1.bf16.msra.mxu0 0
    %820 = vmatprep.subr.bf16.mxu0 0
    %821 = vmatpush1.bf16.msra.mxu0 0
    %822 = vmatprep.subr.bf16.mxu0 0
    %823 = vmatpush1.bf16.msra.mxu0 0
    %824 = vmatprep.subr.bf16.mxu0 0
    %825 = vmatpush1.bf16.msra.mxu0 0
    %826 = vmatprep.subr.bf16.mxu0 0
    %827 = vmatpush1.bf16.msra.mxu0 0
    %828 = vmatprep.mubr.bf16.mxu0 0
    %829 = vmatmul.mubr.bf16.gmra.mrb[0].mxu0 %v665
    %v830 = vpop.f32.mrb[0].mxu0
    %v831 = vadd.f32 %v788, %v830
    %v832 = vpop.f32.mrb[0].mxu0
    %v833 = vadd.f32 %v790, %v832
    %v834 = vpop.f32.mrb[0].mxu0
    %v835 = vadd.f32 %v792, %v834
    %v836 = vpop.f32.mrb[0].mxu0
    %v837 = vadd.f32 %v794, %v836
    %838 = vdwg.mxu0
    %v839 = vmax.f32 %v831, 0.0
    %v840 = vmax.f32 %v833, 0.0
    %v841 = vmax.f32 %v835, 0.0
    %v842 = vmax.f32 %v837, 0.0
    %v843 = vpack.c.bf16 %v841, %v839
    %v844 = vpack.c.bf16 %v842, %v840
    %v845 = vld [vmem:[%s3] sm:$0xf]
    %v846 = vld [vmem:[%s3 + $0x4] sm:$0xf]
    %v847 = vld [vmem:[%s3 + $0x8] sm:$0xf]
    %v848 = vld [vmem:[%s3 + $0xc] sm:$0xf]
    %v849 = vld [vmem:[%s3 + $0x10] sm:$0xf]
    %v850 = vld [vmem:[%s3 + $0x14] sm:$0xf]
    %v851 = vld [vmem:[%s3 + $0x18] sm:$0xf]
    %v852 = vld [vmem:[%s3 + $0x1c] sm:$0xf]
    %v853 = vld [vmem:[%s3 + $0x20] sm:$0xf]
    %v854 = vld [vmem:[%s3 + $0x24] sm:$0xf]
    %v855 = vld [vmem:[%s3 + $0x28] sm:$0xf]
    %v856 = vld [vmem:[%s3 + $0x2c] sm:$0xf]
    %v857 = vld [vmem:[%s3 + $0x30] sm:$0xf]
    %v858 = vld [vmem:[%s3 + $0x34] sm:$0xf]
    %v859 = vld [vmem:[%s3 + $0x38] sm:$0xf]
    %v860 = vld [vmem:[%s3 + $0x3c] sm:$0xf]
    %v861 = vld [vmem:[%s3 + $0x40] sm:$0xf]
    %v862 = vld [vmem:[%s3 + $0x44] sm:$0xf]
    %v863 = vld [vmem:[%s3 + $0x48] sm:$0xf]
    %v864 = vld [vmem:[%s3 + $0x4c] sm:$0xf]
    %v865 = vld [vmem:[%s3 + $0x50] sm:$0xf]
    %v866 = vld [vmem:[%s3 + $0x54] sm:$0xf]
    %v867 = vld [vmem:[%s3 + $0x58] sm:$0xf]
    %v868 = vld [vmem:[%s3 + $0x5c] sm:$0xf]
    %v869 = vld [vmem:[%s3 + $0x60] sm:$0xf]
    %v870 = vld [vmem:[%s3 + $0x64] sm:$0xf]
    %v871 = vld [vmem:[%s3 + $0x68] sm:$0xf]
    %v872 = vld [vmem:[%s3 + $0x6c] sm:$0xf]
    %v873 = vld [vmem:[%s3 + $0x70] sm:$0xf]
    %v874 = vld [vmem:[%s3 + $0x74] sm:$0xf]
    %v875 = vld [vmem:[%s3 + $0x78] sm:$0xf]
    %v876 = vld [vmem:[%s3 + $0x7c] sm:$0xf]
    %v877 = vld [vmem:[%s4] sm:$0x1]
    %v879 = vlaneseq
    %v880 = vshrl.u32 %v879, 7
    %v881 = vsub.s32 0, %v880
    %v882 = vrot.slane %v877, %v881
    %v916 = vunpack.c.l.b16 %v845
    %v917 = vunpack.c.l.b16 %v846
    %v918 = vunpack.c.l.b16 %v847
    %v919 = vunpack.c.l.b16 %v848
    %v920 = vunpack.c.l.b16 %v849
    %v921 = vunpack.c.l.b16 %v850
    %v922 = vunpack.c.l.b16 %v851
    %v923 = vunpack.c.l.b16 %v852
    %v924 = vunpack.c.l.b16 %v853
    %v925 = vunpack.c.l.b16 %v854
    %v926 = vunpack.c.l.b16 %v855
    %v927 = vunpack.c.l.b16 %v856
    %v928 = vunpack.c.l.b16 %v857
    %v929 = vunpack.c.l.b16 %v858
    %v930 = vunpack.c.l.b16 %v859
    %v931 = vunpack.c.l.b16 %v860
    %v932 = vunpack.c.l.b16 %v861
    %v933 = vunpack.c.l.b16 %v862
    %v934 = vunpack.c.l.b16 %v863
    %v935 = vunpack.c.l.b16 %v864
    %v936 = vunpack.c.l.b16 %v865
    %v937 = vunpack.c.l.b16 %v866
    %v938 = vunpack.c.l.b16 %v867
    %v939 = vunpack.c.l.b16 %v868
    %v940 = vunpack.c.l.b16 %v869
    %v941 = vunpack.c.l.b16 %v870
    %v942 = vunpack.c.l.b16 %v871
    %v943 = vunpack.c.l.b16 %v872
    %v944 = vunpack.c.l.b16 %v873
    %v945 = vunpack.c.l.b16 %v874
    %v946 = vunpack.c.l.b16 %v875
    %v947 = vunpack.c.l.b16 %v876
    %v948 = vpack.c.b16 %v917, %v916
    %v949 = vpack.c.b16 %v919, %v918
    %v950 = vpack.c.b16 %v921, %v920
    %v951 = vpack.c.b16 %v923, %v922
    %v952 = vpack.c.b16 %v925, %v924
    %v953 = vpack.c.b16 %v927, %v926
    %v954 = vpack.c.b16 %v929, %v928
    %v955 = vpack.c.b16 %v931, %v930
    %v956 = vpack.c.b16 %v933, %v932
    %v957 = vpack.c.b16 %v935, %v934
    %v958 = vpack.c.b16 %v937, %v936
    %v959 = vpack.c.b16 %v939, %v938
    %v960 = vpack.c.b16 %v941, %v940
    %v961 = vpack.c.b16 %v943, %v942
    %v962 = vpack.c.b16 %v945, %v944
    %v963 = vpack.c.b16 %v947, %v946
    %980 = vmatprep.subr.bf16.mxu0 0
    %981 = vmatpush1.bf16.msra.mxu0 %v948
    %982 = vmatprep.subr.bf16.mxu0 0
    %983 = vmatpush1.bf16.msra.mxu0 %v949
    %984 = vmatprep.subr.bf16.mxu0 0
    %985 = vmatpush1.bf16.msra.mxu0 %v950
    %986 = vmatprep.subr.bf16.mxu0 0
    %987 = vmatpush1.bf16.msra.mxu0 %v951
    %988 = vmatprep.subr.bf16.mxu0 0
    %989 = vmatpush1.bf16.msra.mxu0 %v952
    %990 = vmatprep.subr.bf16.mxu0 0
    %991 = vmatpush1.bf16.msra.mxu0 %v953
    %992 = vmatprep.subr.bf16.mxu0 0
    %993 = vmatpush1.bf16.msra.mxu0 %v954
    %994 = vmatprep.subr.bf16.mxu0 0
    %995 = vmatpush1.bf16.msra.mxu0 %v955
    %996 = vmatprep.subr.bf16.mxu0 0
    %997 = vmatpush1.bf16.msra.mxu0 %v956
    %998 = vmatprep.subr.bf16.mxu0 0
    %999 = vmatpush1.bf16.msra.mxu0 %v957
    %1000 = vmatprep.subr.bf16.mxu0 0
    %1001 = vmatpush1.bf16.msra.mxu0 %v958
    %1002 = vmatprep.subr.bf16.mxu0 0
    %1003 = vmatpush1.bf16.msra.mxu0 %v959
    %1004 = vmatprep.subr.bf16.mxu0 0
    %1005 = vmatpush1.bf16.msra.mxu0 %v960
    %1006 = vmatprep.subr.bf16.mxu0 0
    %1007 = vmatpush1.bf16.msra.mxu0 %v961
    %1008 = vmatprep.subr.bf16.mxu0 0
    %1009 = vmatpush1.bf16.msra.mxu0 %v962
    %1010 = vmatprep.subr.bf16.mxu0 0
    %1011 = vmatpush1.bf16.msra.mxu0 %v963
    %1012 = vmatprep.mubr.bf16.mxu0 %v844
    %1013 = vmatmul.mubr.bf16.gmra.mrb[0].mxu0 %v843
    %v1014 = vpop.f32.mrb[0].mxu0
    %v1015 = vadd.f32 %v882, %v1014
    %v1016 = vpop.f32.mrb[0].mxu0
    %v1017 = vpop.f32.mrb[0].mxu0
    %v1018 = vadd.f32 %v882, %v1017
    %v1019 = vpop.f32.mrb[0].mxu0
    %1020 = vdwg.mxu0
    %v1021 = vmax.f32 %v1015, 0.0
    %v1022 = vmax.f32 %v1018, 0.0
    %v1023 = vpack.c.bf16 %v1022, %v1021
    %v1024 = vld [vmem:[%s5] sm:$0xf]
    %v1025 = vld [vmem:[%s5 + $0x4] sm:$0xf]
    %v1026 = vld [vmem:[%s5 + $0x8] sm:$0xf]
    %v1027 = vld [vmem:[%s5 + $0xc] sm:$0xf]
    %v1028 = vld [vmem:[%s5 + $0x10] sm:$0xf]
    %v1029 = vld [vmem:[%s5 + $0x14] sm:$0xf]
    %v1030 = vld [vmem:[%s5 + $0x18] sm:$0xf]
    %v1031 = vld [vmem:[%s5 + $0x1c] sm:$0xf]
    %v1032 = vld [vmem:[%s6] sm:$0x1]
    %v1034 = vlaneseq
    %v1035 = vshrl.u32 %v1034, 7
    %v1036 = vsub.s32 0, %v1035
    %v1037 = vrot.slane %v1032, %v1036
    %v1047 = vunpack.c.l.b16 %v1024
    %v1048 = vunpack.c.l.b16 %v1025
    %v1049 = vunpack.c.l.b16 %v1026
    %v1050 = vunpack.c.l.b16 %v1027
    %v1051 = vunpack.c.l.b16 %v1028
    %v1052 = vunpack.c.l.b16 %v1029
    %v1053 = vunpack.c.l.b16 %v1030
    %v1054 = vunpack.c.l.b16 %v1031
    %v1055 = vpack.c.b16 %v1048, %v1047
    %v1056 = vpack.c.b16 %v1050, %v1049
    %v1057 = vpack.c.b16 %v1052, %v1051
    %v1058 = vpack.c.b16 %v1054, %v1053
    %vm1063 = vcmask 523264
    %v1065 = vsel %vm1063, %v1023, 0
    %1067 = vmatprep.subr.bf16.mxu0 0
    %1068 = vmatpush1.bf16.msra.mxu0 %v1055
    %1069 = vmatprep.subr.bf16.mxu0 0
    %1070 = vmatpush1.bf16.msra.mxu0 %v1056
    %1071 = vmatprep.subr.bf16.mxu0 0
    %1072 = vmatpush1.bf16.msra.mxu0 %v1057
    %1073 = vmatprep.subr.bf16.mxu0 0
    %1074 = vmatpush1.bf16.msra.mxu0 %v1058
    %1075 = vmatprep.subr.bf16.mxu0 0
    %1076 = vmatpush1.bf16.msra.mxu0 0
    %1077 = vmatprep.subr.bf16.mxu0 0
    %1078 = vmatpush1.bf16.msra.mxu0 0
    %1079 = vmatprep.subr.bf16.mxu0 0
    %1080 = vmatpush1.bf16.msra.mxu0 0
    %1081 = vmatprep.subr.bf16.mxu0 0
    %1082 = vmatpush1.bf16.msra.mxu0 0
    %1083 = vmatprep.subr.bf16.mxu0 0
    %1084 = vmatpush1.bf16.msra.mxu0 0
    %1085 = vmatprep.subr.bf16.mxu0 0
    %1086 = vmatpush1.bf16.msra.mxu0 0
    %1087 = vmatprep.subr.bf16.mxu0 0
    %1088 = vmatpush1.bf16.msra.mxu0 0
    %1089 = vmatprep.subr.bf16.mxu0 0
    %1090 = vmatpush1.bf16.msra.mxu0 0
    %1091 = vmatprep.subr.bf16.mxu0 0
    %1092 = vmatpush1.bf16.msra.mxu0 0
    %1093 = vmatprep.subr.bf16.mxu0 0
    %1094 = vmatpush1.bf16.msra.mxu0 0
    %1095 = vmatprep.subr.bf16.mxu0 0
    %1096 = vmatpush1.bf16.msra.mxu0 0
    %1097 = vmatprep.subr.bf16.mxu0 0
    %1098 = vmatpush1.bf16.msra.mxu0 0
    %1099 = vmatprep.mubr.bf16.mxu0 0
    %1100 = vmatmul.mubr.bf16.gmra.mrb[0].mxu0 %v1065
    %v1101 = vpop.f32.mrb[0].mxu0
    %v1102 = vadd.f32 %v1037, %v1101
    %v1103 = vpop.f32.mrb[0].mxu0
    %v1104 = vpop.f32.mrb[0].mxu0
    %v1105 = vadd.f32 %v1037, %v1104
    %v1106 = vpop.f32.mrb[0].mxu0
    %1107 = vdwg.mxu0
    %v1108 = vmax.f32 %v1102, 0.0
    %v1109 = vmax.f32 %v1105, 0.0
    %1110 = vst [vmem:[#allocation5] sm:$0xff] %v1108
    %1111 = vst [vmem:[#allocation5 + $0x8] sm:$0xff] %v1109
    // Predicated region
    $region34: #{tpu_custom_call.1} parent=1 // pred_check
      _
    $region35: #{tpu_custom_call.1} parent=1 // pred_check_branch
      %1113 = sbr.rel (0) target = $region37
    $region36: #{tpu_custom_call.1} parent=1 // pred_region
      %s1115 = ssub.s32 256, 256
      %1116 = vsyncadd [#allocation4], %s1115
      %s1117 = sshll.u32 [#allocation5], 4
      %s1118 = int_to_ptr.vmem [resolvable:$true] %s1117
      %1123 = dma.vmem_to_hbm [thread:$0]  %s1118, 256, %s7, [#allocation4], 128, 128, 8
    $region37: #{tpu_custom_call.1} parent=1 // pred_fallthru
      _
    // Predicated region
    $region38: #{tpu_custom_call.1} parent=1 // pred_check
      _
    $region39: #{tpu_custom_call.1} parent=1 // pred_check_branch
      %1125 = sbr.rel (0) target = $region41
    $region40: #{tpu_custom_call.1} parent=1 // pred_region
      %1126 = dma.done [#allocation4], 256
    $region41: #{tpu_custom_call.1} parent=1 // pred_fallthru
      _
    %1127 = vsyncpa [#allocation3], 1
    %1128 = vsyncpa [#allocation4], 1

</llo_original>
